<compile_context>
chip_gen: v5e
topology: v5e:2x2
jax: 0.10.0
libtpu: 0.0.40
codegen_flags: <defaults>
</compile_context>

<pallas_src>
import jax
import jax.numpy as jnp
from jax.experimental import pallas as pl
from jax.experimental.pallas import tpu as pltpu


def _cdiv(a, b):
    return -(-a // b)


def _add_bias_kernel(f_ref, b_ref, o_ref):
    # f_ref: (tm, tc) tile of the (N*C, H*W) slab.
    # b_ref: (tm, 1) per-row bias, broadcast across the lane (H*W) axis.
    o_ref[...] = f_ref[...] + b_ref[...]


def _target_block_bytes():
    """Per-generation block budget (queried once at import time)."""
    try:
        kind = jax.devices()[0].device_kind.lower()
    except Exception:
        return 1 << 20
    if "v5" in kind:
        # v5e: 16 MiB scoped-VMEM default and ~820 GB/s -> modest blocks.
        return 1 << 20
    if "v6" in kind:
        return 2 << 20
    if "7" in kind:
        # v7x: ~3.2 TB/s per TC -> bigger blocks to amortize ~0.35us/step.
        return 4 << 20
    return 2 << 20


_TARGET_BLOCK_BYTES = _target_block_bytes()
_MIN_PALLAS_BYTES = 128 * 1024  # below this, plain fused broadcast-add wins


def _choose_tiles(rows, cols, itemsize, target_block_bytes):
    """Pick (tm, tc): lane-dense, ~target-sized, (8,128)/packing-legal blocks."""
    # Dtype-aware sublane multiple: 8 for f32, 16 for bf16, 32 for int8/fp8.
    sub = max(8, 32 // itemsize)

    if cols * itemsize * sub <= target_block_bytes:
        # A full row fits the budget: each block DMA is one contiguous HBM
        # range (best burst efficiency for a purely HBM-bound kernel).
        tc = cols
    elif cols >= 128:
        # Lane-dense column tile: multiple of 128, so only the final column
        # tile is masked and the block size stays bounded.
        tc = 128 * max(1, min(cols // 128,
                              target_block_bytes // (128 * itemsize * sub)))
    else:
        tc = cols  # < 128 lanes: full-extent block is legal.

    tm = target_block_bytes // (tc * itemsize)
    tm = max(sub, (tm // sub) * sub)
    if tm >= rows:
        tm = rows  # full-extent sublane block, always legal.

    # Keep >=2 grid steps along a "parallel" axis for large tensors so both
    # v7x TensorCores get work (a (1,1) grid leaves one TC idle).
    total_bytes = rows * cols * itemsize
    if total_bytes > (2 << 20) and _cdiv(rows, tm) == 1 and _cdiv(cols, tc) == 1:
        if rows >= 2 * sub:
            tm = max(sub, ((rows // 2) // sub) * sub)
        elif cols >= 256:
            tc = max(128, 128 * ((cols // 128 + 1) // 2))
    return tm, tc


@jax.jit
def _encode_one(feature_nchw, pos, lvl):
    """feature_nchw: (N, C, H, W); pos, lvl: (1, C, 1, 1). Returns (N, C, H, W)."""
    N, C, H, W = feature_nchw.shape
    dtype = feature_nchw.dtype
    itemsize = jnp.dtype(dtype).itemsize

    # Combined per-channel bias, summed once in f32, single cast to dtype.
    bias_c = (pos.reshape(C).astype(jnp.float32)
              + lvl.reshape(C).astype(jnp.float32)).astype(dtype)

    rows, cols = N * C, H * W
    total_bytes = rows * cols * itemsize
    if total_bytes < _MIN_PALLAS_BYTES:
        # Tiny scale: fixed launch + (1,1)-grid overhead dominates; let XLA
        # fuse the broadcast-add instead.
        return feature_nchw + bias_c.reshape(1, C, 1, 1)

    # Zero-cost reshape: NCHW -> (N*C, H*W).  Bias becomes per-row (N*C, 1).
    x = feature_nchw.reshape(rows, cols)
    bias_rows = jnp.broadcast_to(bias_c[None, :], (N, C)).reshape(rows, 1)

    tm, tc = _choose_tiles(rows, cols, itemsize, _TARGET_BLOCK_BYTES)
    grid = (_cdiv(rows, tm), _cdiv(cols, tc))

    block_bytes = tm * tc * itemsize
    # Double-buffered input + output blocks, plus headroom; 32 MiB is safe on
    # every generation (v7x physical VMEM is 64 MiB).
    vmem_limit = int(min(32 << 20, max(16 << 20, 4 * block_bytes + (2 << 20))))

    out = pl.pallas_call(
        _add_bias_kernel,
        out_shape=jax.ShapeDtypeStruct((rows, cols), dtype),
        grid_spec=pltpu.PrefetchScalarGridSpec(
            num_scalar_prefetch=0,
            grid=grid,
            # Column axis is the innermost grid axis: the bias block index
            # (i, 0) is constant across the inner j loop, so its re-DMA is
            # elided.  Do not reorder the grid.
            in_specs=[
                pl.BlockSpec((tm, tc), lambda i, j: (i, j)),
                pl.BlockSpec((tm, 1), lambda i, j: (i, 0)),
            ],
            out_specs=pl.BlockSpec((tm, tc), lambda i, j: (i, j)),
        ),
        compiler_params=pltpu.CompilerParams(
            dimension_semantics=("parallel", "parallel"),
            vmem_limit_bytes=vmem_limit,
        ),
        # In-place add: alias the feature slab to the output so no extra
        # full-size output allocation is needed when the buffer is donatable.
        input_output_aliases={0: 0},
        cost_estimate=pl.CostEstimate(
            flops=rows * cols,
            transcendentals=0,
            bytes_accessed=2 * rows * cols * itemsize + rows * itemsize,
        ),
    )(x, bias_rows)

    # Zero-cost reshape back to NCHW.
    return out.reshape(N, C, H, W)


class PositionLevelEncoding:
    """JAX/Pallas port of the PyTorch PositionLevelEncoding module."""

    def __init__(self, feature_dim, num_scales, key):
        # PyTorch inits these params to zeros; here we draw small deterministic
        # random values so the kernel's effect is observable in the test.
        keys = jax.random.split(key, 2 * num_scales)
        self.position_encodings = [
            0.1 * jax.random.normal(keys[i], (1, feature_dim, 1, 1), jnp.float32)
            for i in range(num_scales)
        ]
        self.level_encodings = [
            0.1 * jax.random.normal(keys[num_scales + i], (1, feature_dim, 1, 1), jnp.float32)
            for i in range(num_scales)
        ]

    def __call__(self, features):
        encoded_features = []
        n_pos = len(self.position_encodings)
        n_lvl = len(self.level_encodings)
        for i, feature in enumerate(features):
            pos = self.position_encodings[min(i, n_pos - 1)]
            lvl = self.level_encodings[min(i, n_lvl - 1)]
            if pos.shape[1] != feature.shape[1]:
                raise ValueError(
                    f"Encoding channels ({pos.shape[1]}) don't match feature "
                    f"channels ({feature.shape[1]}) at index {i}"
                )
            encoded_features.append(_encode_one(feature, pos, lvl))
        return encoded_features


def _reference(features, pos_list, lvl_list):
    out = []
    for i, f in enumerate(features):
        pos = pos_list[min(i, len(pos_list) - 1)]
        lvl = lvl_list[min(i, len(lvl_list) - 1)]
        out.append(f + pos + lvl)  # broadcast (1,C,1,1) over (N,C,H,W)
    return out


if __name__ == "__main__":
    key = jax.random.PRNGKey(0)
    k_params, k_f0, k_f1, k_f2 = jax.random.split(key, 4)

    feature_dim = 4
    num_scales = 2
    module = PositionLevelEncoding(feature_dim, num_scales, k_params)

    # Multi-scale NCHW features:
    #  - f0: large enough to take the Pallas path, H*W a multiple of 128.
    #  - f1: Pallas path with a non-128-multiple H*W (full-row block fallback).
    #  - f2: tiny level, exercises the plain-JAX bypass and the min(i, len-1)
    #        clamp on the encoding index.
    features = [
        jax.random.normal(k_f0, (2, feature_dim, 128, 128), jnp.float32),
        jax.random.normal(k_f1, (2, feature_dim, 100, 100), jnp.float32),
        jax.random.normal(k_f2, (2, feature_dim, 16, 16), jnp.float32),
    ]

    out = module(features)
    out = [jax.block_until_ready(o) for o in out]

    ref = _reference(features, module.position_encodings, module.level_encodings)
    for o, r in zip(out, ref):
        assert o.shape == r.shape and o.dtype == r.dtype
        assert jnp.allclose(o, r, atol=1e-6, rtol=1e-6)

    print("KERNEL_OK")
</pallas_src>

<mosaic_0001>
module attributes {stable_mosaic.version = 11 : i64} {
  func.func @_add_bias_kernel(%arg0: i32, %arg1: i32, %arg2: memref<8x16384xf32, #tpu.memory_space<vmem>>, %arg3: memref<8x1xf32, #tpu.memory_space<vmem>>, %arg4: memref<8x16384xf32, #tpu.memory_space<vmem>>) attributes {dimension_semantics = [#tpu.dimension_semantics<parallel>, #tpu.dimension_semantics<parallel>], iteration_bounds = array<i64: 1, 1>, scalar_prefetch = 0 : i64, scratch_operands = 0 : i64, tpu.core_type = #tpu.core_type<tc>, window_params = [{transform_indices = @transform_0, window_bounds = array<i64: 8, 16384>}, {transform_indices = @transform_1, window_bounds = array<i64: 8, 1>}, {transform_indices = @transform_2, window_bounds = array<i64: 8, 16384>}]} {
    %c0 = arith.constant 0 : index
    %c0_0 = arith.constant 0 : index
    %0 = vector.load %arg2[%c0, %c0_0] : memref<8x16384xf32, #tpu.memory_space<vmem>>, vector<8x16384xf32>
    %c0_1 = arith.constant 0 : index
    %c0_2 = arith.constant 0 : index
    %1 = vector.load %arg3[%c0_1, %c0_2] : memref<8x1xf32, #tpu.memory_space<vmem>>, vector<8x1xf32>
    %2 = vector.broadcast %1 : vector<8x1xf32> to vector<8x16384xf32>
    %3 = arith.addf %0, %2 : vector<8x16384xf32>
    %c0_3 = arith.constant 0 : index
    %c0_4 = arith.constant 0 : index
    %4 = vector.load %arg4[%c0_3, %c0_4] : memref<8x16384xf32, #tpu.memory_space<vmem>>, vector<8x16384xf32>
    tpu.vector_store %arg4[%c0_3, %c0_4], %3 {strides = array<i32>} : memref<8x16384xf32, #tpu.memory_space<vmem>>, vector<8x16384xf32>,
    return
  }
  func.func @transform_0(%arg0: i32, %arg1: i32) -> (i32, i32) {
    %c0_i32 = arith.constant 0 : i32
    return %arg0, %arg1 : i32, i32
  }
  func.func @transform_1(%arg0: i32, %arg1: i32) -> (i32, i32) {
    %c0_i32 = arith.constant 0 : i32
    %c0_i32_0 = arith.constant 0 : i32
    return %arg0, %c0_i32 : i32, i32
  }
  func.func @transform_2(%arg0: i32, %arg1: i32) -> (i32, i32) {
    %c0_i32 = arith.constant 0 : i32
    return %arg0, %arg1 : i32, i32
  }
}

</mosaic_0001>

<llo_original>
// kernel: _encode_one.1
$region0: #{_encode_one.1}
  #allocation0 [shape = 'u32[]', space=smem, size = 0x4, offset = 0x4, fixed_abs, tag = 'smem constant byte address 0x4 - core index']
  #allocation1 [shape = 'u32[72,128]{1,0:T(1,128)}', space=vmem, size = 0x9000, scoped, tag = 'internal scratch']
  %s0 = inlined_call_operand.vmem [shape: f32[8,16384], index: 0, kind: input, shape index: {}, may-alias: {0,2}]
  %s1 = inlined_call_operand.vmem [shape: f32[8,1], index: 1, kind: input, shape index: {}]
  %s2 = inlined_call_operand.vmem [shape: f32[8,16384], index: 2, kind: output, shape index: {}, may-alias: {0,2}]
  %s3 = sld [smem:[#allocation0]]
  $region18: #{_encode_one.1} parent=0
    _
  %s5 = ssub.s32 1, %s3
  %s6 = scalar_select 0, %s5, %s3
  // Predicated region
  $region2: #{_encode_one.1} parent=0 // pred_check
    _
  $region3: #{_encode_one.1} parent=0 // pred_check_branch
    %8 = sbr.rel (0) target = $region5
  $region4: #{_encode_one.1} parent=0 // pred_region
    _
  $region5: #{_encode_one.1} parent=0 // pred_fallthru
    _
  // Predicated region
  $region6: #{_encode_one.1} parent=0 // pred_check
    _
  $region7: #{_encode_one.1} parent=0 // pred_check_branch
    %10 = sbr.rel (0) target = $region9
  $region8: #{_encode_one.1} parent=0 // pred_region
    _
  $region9: #{_encode_one.1} parent=0 // pred_fallthru
    _
  %v11 = vld [vmem:[%s0] sm:$0xff]
  %v12 = vld [vmem:[%s0 + $0x8] sm:$0xff]
  %v13 = vld [vmem:[%s0 + $0x10] sm:$0xff]
  %v14 = vld [vmem:[%s0 + $0x18] sm:$0xff]
  %v15 = vld [vmem:[%s0 + $0x20] sm:$0xff]
  %v16 = vld [vmem:[%s0 + $0x28] sm:$0xff]
  %v17 = vld [vmem:[%s0 + $0x30] sm:$0xff]
  %v18 = vld [vmem:[%s0 + $0x38] sm:$0xff]
  %v19 = vld [vmem:[%s0 + $0x40] sm:$0xff]
  %v20 = vld [vmem:[%s0 + $0x48] sm:$0xff]
  %v21 = vld [vmem:[%s0 + $0x50] sm:$0xff]
  %v22 = vld [vmem:[%s0 + $0x58] sm:$0xff]
  %v23 = vld [vmem:[%s0 + $0x60] sm:$0xff]
  %v24 = vld [vmem:[%s0 + $0x68] sm:$0xff]
  %v25 = vld [vmem:[%s0 + $0x70] sm:$0xff]
  %v26 = vld [vmem:[%s0 + $0x78] sm:$0xff]
  %v27 = vld [vmem:[%s0 + $0x80] sm:$0xff]
  %v28 = vld [vmem:[%s0 + $0x88] sm:$0xff]
  %v29 = vld [vmem:[%s0 + $0x90] sm:$0xff]
  %v30 = vld [vmem:[%s0 + $0x98] sm:$0xff]
  %v31 = vld [vmem:[%s0 + $0xa0] sm:$0xff]
  %v32 = vld [vmem:[%s0 + $0xa8] sm:$0xff]
  %v33 = vld [vmem:[%s0 + $0xb0] sm:$0xff]
  %v34 = vld [vmem:[%s0 + $0xb8] sm:$0xff]
  %v35 = vld [vmem:[%s0 + $0xc0] sm:$0xff]
  %v36 = vld [vmem:[%s0 + $0xc8] sm:$0xff]
  %v37 = vld [vmem:[%s0 + $0xd0] sm:$0xff]
  %v38 = vld [vmem:[%s0 + $0xd8] sm:$0xff]
  %v39 = vld [vmem:[%s0 + $0xe0] sm:$0xff]
  %v40 = vld [vmem:[%s0 + $0xe8] sm:$0xff]
  %v41 = vld [vmem:[%s0 + $0xf0] sm:$0xff]
  %v42 = vld [vmem:[%s0 + $0xf8] sm:$0xff]
  %v43 = vld [vmem:[%s0 + $0x100] sm:$0xff]
  %v44 = vld [vmem:[%s0 + $0x108] sm:$0xff]
  %v45 = vld [vmem:[%s0 + $0x110] sm:$0xff]
  %v46 = vld [vmem:[%s0 + $0x118] sm:$0xff]
  %v47 = vld [vmem:[%s0 + $0x120] sm:$0xff]
  %v48 = vld [vmem:[%s0 + $0x128] sm:$0xff]
  %v49 = vld [vmem:[%s0 + $0x130] sm:$0xff]
  %v50 = vld [vmem:[%s0 + $0x138] sm:$0xff]
  %v51 = vld [vmem:[%s0 + $0x140] sm:$0xff]
  %v52 = vld [vmem:[%s0 + $0x148] sm:$0xff]
  %v53 = vld [vmem:[%s0 + $0x150] sm:$0xff]
  %v54 = vld [vmem:[%s0 + $0x158] sm:$0xff]
  %v55 = vld [vmem:[%s0 + $0x160] sm:$0xff]
  %v56 = vld [vmem:[%s0 + $0x168] sm:$0xff]
  %v57 = vld [vmem:[%s0 + $0x170] sm:$0xff]
  %v58 = vld [vmem:[%s0 + $0x178] sm:$0xff]
  %v59 = vld [vmem:[%s0 + $0x180] sm:$0xff]
  %v60 = vld [vmem:[%s0 + $0x188] sm:$0xff]
  %v61 = vld [vmem:[%s0 + $0x190] sm:$0xff]
  %v62 = vld [vmem:[%s0 + $0x198] sm:$0xff]
  %v63 = vld [vmem:[%s0 + $0x1a0] sm:$0xff]
  %v64 = vld [vmem:[%s0 + $0x1a8] sm:$0xff]
  %v65 = vld [vmem:[%s0 + $0x1b0] sm:$0xff]
  %v66 = vld [vmem:[%s0 + $0x1b8] sm:$0xff]
  %v67 = vld [vmem:[%s0 + $0x1c0] sm:$0xff]
  %v68 = vld [vmem:[%s0 + $0x1c8] sm:$0xff]
  %v69 = vld [vmem:[%s0 + $0x1d0] sm:$0xff]
  %v70 = vld [vmem:[%s0 + $0x1d8] sm:$0xff]
  %v71 = vld [vmem:[%s0 + $0x1e0] sm:$0xff]
  %v72 = vld [vmem:[%s0 + $0x1e8] sm:$0xff]
  %v73 = vld [vmem:[%s0 + $0x1f0] sm:$0xff]
  %v74 = vld [vmem:[%s0 + $0x1f8] sm:$0xff]
  %v75 = vld [vmem:[%s0 + $0x200] sm:$0xff]
  %v76 = vld [vmem:[%s0 + $0x208] sm:$0xff]
  %v77 = vld [vmem:[%s0 + $0x210] sm:$0xff]
  %v78 = vld [vmem:[%s0 + $0x218] sm:$0xff]
  %v79 = vld [vmem:[%s0 + $0x220] sm:$0xff]
  %v80 = vld [vmem:[%s0 + $0x228] sm:$0xff]
  %v81 = vld [vmem:[%s0 + $0x230] sm:$0xff]
  %v82 = vld [vmem:[%s0 + $0x238] sm:$0xff]
  %v83 = vld [vmem:[%s0 + $0x240] sm:$0xff]
  %v84 = vld [vmem:[%s0 + $0x248] sm:$0xff]
  %v85 = vld [vmem:[%s0 + $0x250] sm:$0xff]
  %v86 = vld [vmem:[%s0 + $0x258] sm:$0xff]
  %v87 = vld [vmem:[%s0 + $0x260] sm:$0xff]
  %v88 = vld [vmem:[%s0 + $0x268] sm:$0xff]
  %v89 = vld [vmem:[%s0 + $0x270] sm:$0xff]
  %v90 = vld [vmem:[%s0 + $0x278] sm:$0xff]
  %v91 = vld [vmem:[%s0 + $0x280] sm:$0xff]
  %v92 = vld [vmem:[%s0 + $0x288] sm:$0xff]
  %v93 = vld [vmem:[%s0 + $0x290] sm:$0xff]
  %v94 = vld [vmem:[%s0 + $0x298] sm:$0xff]
  %v95 = vld [vmem:[%s0 + $0x2a0] sm:$0xff]
  %v96 = vld [vmem:[%s0 + $0x2a8] sm:$0xff]
  %v97 = vld [vmem:[%s0 + $0x2b0] sm:$0xff]
  %v98 = vld [vmem:[%s0 + $0x2b8] sm:$0xff]
  %v99 = vld [vmem:[%s0 + $0x2c0] sm:$0xff]
  %v100 = vld [vmem:[%s0 + $0x2c8] sm:$0xff]
  %v101 = vld [vmem:[%s0 + $0x2d0] sm:$0xff]
  %v102 = vld [vmem:[%s0 + $0x2d8] sm:$0xff]
  %v103 = vld [vmem:[%s0 + $0x2e0] sm:$0xff]
  %v104 = vld [vmem:[%s0 + $0x2e8] sm:$0xff]
  %v105 = vld [vmem:[%s0 + $0x2f0] sm:$0xff]
  %v106 = vld [vmem:[%s0 + $0x2f8] sm:$0xff]
  %v107 = vld [vmem:[%s0 + $0x300] sm:$0xff]
  %v108 = vld [vmem:[%s0 + $0x308] sm:$0xff]
  %v109 = vld [vmem:[%s0 + $0x310] sm:$0xff]
  %v110 = vld [vmem:[%s0 + $0x318] sm:$0xff]
  %v111 = vld [vmem:[%s0 + $0x320] sm:$0xff]
  %v112 = vld [vmem:[%s0 + $0x328] sm:$0xff]
  %v113 = vld [vmem:[%s0 + $0x330] sm:$0xff]
  %v114 = vld [vmem:[%s0 + $0x338] sm:$0xff]
  %v115 = vld [vmem:[%s0 + $0x340] sm:$0xff]
  %v116 = vld [vmem:[%s0 + $0x348] sm:$0xff]
  %v117 = vld [vmem:[%s0 + $0x350] sm:$0xff]
  %v118 = vld [vmem:[%s0 + $0x358] sm:$0xff]
  %v119 = vld [vmem:[%s0 + $0x360] sm:$0xff]
  %v120 = vld [vmem:[%s0 + $0x368] sm:$0xff]
  %v121 = vld [vmem:[%s0 + $0x370] sm:$0xff]
  %v122 = vld [vmem:[%s0 + $0x378] sm:$0xff]
  %v123 = vld [vmem:[%s0 + $0x380] sm:$0xff]
  %v124 = vld [vmem:[%s0 + $0x388] sm:$0xff]
  %v125 = vld [vmem:[%s0 + $0x390] sm:$0xff]
  %v126 = vld [vmem:[%s0 + $0x398] sm:$0xff]
  %v127 = vld [vmem:[%s0 + $0x3a0] sm:$0xff]
  %v128 = vld [vmem:[%s0 + $0x3a8] sm:$0xff]
  %v129 = vld [vmem:[%s0 + $0x3b0] sm:$0xff]
  %v130 = vld [vmem:[%s0 + $0x3b8] sm:$0xff]
  %v131 = vld [vmem:[%s0 + $0x3c0] sm:$0xff]
  %v132 = vld [vmem:[%s0 + $0x3c8] sm:$0xff]
  %v133 = vld [vmem:[%s0 + $0x3d0] sm:$0xff]
  %v134 = vld [vmem:[%s0 + $0x3d8] sm:$0xff]
  %v135 = vld [vmem:[%s0 + $0x3e0] sm:$0xff]
  %v136 = vld [vmem:[%s0 + $0x3e8] sm:$0xff]
  %v137 = vld [vmem:[%s0 + $0x3f0] sm:$0xff]
  %v138 = vld [vmem:[%s0 + $0x3f8] sm:$0xff]
  %v139 = vld [vmem:[%s1] sm:$0xff]
  %141 = vset.pattern.permute.xlu0 0
  %142 = vperm.xlu0 %141, %v139
  %v143 = vpop.permute.xlu0 %142
  %v145 = vadd.f32 %v11, %v143
  %v146 = vadd.f32 %v12, %v143
  %v147 = vadd.f32 %v13, %v143
  %v148 = vadd.f32 %v14, %v143
  %v149 = vadd.f32 %v15, %v143
  %v150 = vadd.f32 %v16, %v143
  %v151 = vadd.f32 %v17, %v143
  %v152 = vadd.f32 %v18, %v143
  %v153 = vadd.f32 %v19, %v143
  %v154 = vadd.f32 %v20, %v143
  %v155 = vadd.f32 %v21, %v143
  %v156 = vadd.f32 %v22, %v143
  %v157 = vadd.f32 %v23, %v143
  %v158 = vadd.f32 %v24, %v143
  %v159 = vadd.f32 %v25, %v143
  %v160 = vadd.f32 %v26, %v143
  %v161 = vadd.f32 %v27, %v143
  %v162 = vadd.f32 %v28, %v143
  %v163 = vadd.f32 %v29, %v143
  %v164 = vadd.f32 %v30, %v143
  %v165 = vadd.f32 %v31, %v143
  %v166 = vadd.f32 %v32, %v143
  %v167 = vadd.f32 %v33, %v143
  %v168 = vadd.f32 %v34, %v143
  %v169 = vadd.f32 %v35, %v143
  %v170 = vadd.f32 %v36, %v143
  %v171 = vadd.f32 %v37, %v143
  %v172 = vadd.f32 %v38, %v143
  %v173 = vadd.f32 %v39, %v143
  %v174 = vadd.f32 %v40, %v143
  %v175 = vadd.f32 %v41, %v143
  %v176 = vadd.f32 %v42, %v143
  %v177 = vadd.f32 %v43, %v143
  %v178 = vadd.f32 %v44, %v143
  %v179 = vadd.f32 %v45, %v143
  %v180 = vadd.f32 %v46, %v143
  %v181 = vadd.f32 %v47, %v143
  %v182 = vadd.f32 %v48, %v143
  %v183 = vadd.f32 %v49, %v143
  %v184 = vadd.f32 %v50, %v143
  %v185 = vadd.f32 %v51, %v143
  %v186 = vadd.f32 %v52, %v143
  %v187 = vadd.f32 %v53, %v143
  %v188 = vadd.f32 %v54, %v143
  %v189 = vadd.f32 %v55, %v143
  %v190 = vadd.f32 %v56, %v143
  %v191 = vadd.f32 %v57, %v143
  %v192 = vadd.f32 %v58, %v143
  %v193 = vadd.f32 %v59, %v143
  %v194 = vadd.f32 %v60, %v143
  %v195 = vadd.f32 %v61, %v143
  %v196 = vadd.f32 %v62, %v143
  %v197 = vadd.f32 %v63, %v143
  %v198 = vadd.f32 %v64, %v143
  %v199 = vadd.f32 %v65, %v143
  %v200 = vadd.f32 %v66, %v143
  %v201 = vadd.f32 %v67, %v143
  %v202 = vadd.f32 %v68, %v143
  %v203 = vadd.f32 %v69, %v143
  %v204 = vadd.f32 %v70, %v143
  %v205 = vadd.f32 %v71, %v143
  %v206 = vadd.f32 %v72, %v143
  %v207 = vadd.f32 %v73, %v143
  %v208 = vadd.f32 %v74, %v143
  %v209 = vadd.f32 %v75, %v143
  %v210 = vadd.f32 %v76, %v143
  %v211 = vadd.f32 %v77, %v143
  %v212 = vadd.f32 %v78, %v143
  %v213 = vadd.f32 %v79, %v143
  %v214 = vadd.f32 %v80, %v143
  %v215 = vadd.f32 %v81, %v143
  %v216 = vadd.f32 %v82, %v143
  %v217 = vadd.f32 %v83, %v143
  %v218 = vadd.f32 %v84, %v143
  %v219 = vadd.f32 %v85, %v143
  %v220 = vadd.f32 %v86, %v143
  %v221 = vadd.f32 %v87, %v143
  %v222 = vadd.f32 %v88, %v143
  %v223 = vadd.f32 %v89, %v143
  %v224 = vadd.f32 %v90, %v143
  %v225 = vadd.f32 %v91, %v143
  %v226 = vadd.f32 %v92, %v143
  %v227 = vadd.f32 %v93, %v143
  %v228 = vadd.f32 %v94, %v143
  %v229 = vadd.f32 %v95, %v143
  %v230 = vadd.f32 %v96, %v143
  %v231 = vadd.f32 %v97, %v143
  %v232 = vadd.f32 %v98, %v143
  %v233 = vadd.f32 %v99, %v143
  %v234 = vadd.f32 %v100, %v143
  %v235 = vadd.f32 %v101, %v143
  %v236 = vadd.f32 %v102, %v143
  %v237 = vadd.f32 %v103, %v143
  %v238 = vadd.f32 %v104, %v143
  %v239 = vadd.f32 %v105, %v143
  %v240 = vadd.f32 %v106, %v143
  %v241 = vadd.f32 %v107, %v143
  %v242 = vadd.f32 %v108, %v143
  %v243 = vadd.f32 %v109, %v143
  %v244 = vadd.f32 %v110, %v143
  %v245 = vadd.f32 %v111, %v143
  %v246 = vadd.f32 %v112, %v143
  %v247 = vadd.f32 %v113, %v143
  %v248 = vadd.f32 %v114, %v143
  %v249 = vadd.f32 %v115, %v143
  %v250 = vadd.f32 %v116, %v143
  %v251 = vadd.f32 %v117, %v143
  %v252 = vadd.f32 %v118, %v143
  %v253 = vadd.f32 %v119, %v143
  %v254 = vadd.f32 %v120, %v143
  %v255 = vadd.f32 %v121, %v143
  %v256 = vadd.f32 %v122, %v143
  %v257 = vadd.f32 %v123, %v143
  %v258 = vadd.f32 %v124, %v143
  %v259 = vadd.f32 %v125, %v143
  %v260 = vadd.f32 %v126, %v143
  %v261 = vadd.f32 %v127, %v143
  %v262 = vadd.f32 %v128, %v143
  %v263 = vadd.f32 %v129, %v143
  %v264 = vadd.f32 %v130, %v143
  %v265 = vadd.f32 %v131, %v143
  %v266 = vadd.f32 %v132, %v143
  %v267 = vadd.f32 %v133, %v143
  %v268 = vadd.f32 %v134, %v143
  %v269 = vadd.f32 %v135, %v143
  %v270 = vadd.f32 %v136, %v143
  %v271 = vadd.f32 %v137, %v143
  %v272 = vadd.f32 %v138, %v143
  %273 = vst [vmem:[%s2] sm:$0xff] %v145
  %274 = vst [vmem:[%s2 + $0x8] sm:$0xff] %v146
  %275 = vst [vmem:[%s2 + $0x10] sm:$0xff] %v147
  %276 = vst [vmem:[%s2 + $0x18] sm:$0xff] %v148
  %277 = vst [vmem:[%s2 + $0x20] sm:$0xff] %v149
  %278 = vst [vmem:[%s2 + $0x28] sm:$0xff] %v150
  %279 = vst [vmem:[%s2 + $0x30] sm:$0xff] %v151
  %280 = vst [vmem:[%s2 + $0x38] sm:$0xff] %v152
  %281 = vst [vmem:[%s2 + $0x40] sm:$0xff] %v153
  %282 = vst [vmem:[%s2 + $0x48] sm:$0xff] %v154
  %283 = vst [vmem:[%s2 + $0x50] sm:$0xff] %v155
  %284 = vst [vmem:[%s2 + $0x58] sm:$0xff] %v156
  %285 = vst [vmem:[%s2 + $0x60] sm:$0xff] %v157
  %286 = vst [vmem:[%s2 + $0x68] sm:$0xff] %v158
  %287 = vst [vmem:[%s2 + $0x70] sm:$0xff] %v159
  %288 = vst [vmem:[%s2 + $0x78] sm:$0xff] %v160
  %289 = vst [vmem:[%s2 + $0x80] sm:$0xff] %v161
  %290 = vst [vmem:[%s2 + $0x88] sm:$0xff] %v162
  %291 = vst [vmem:[%s2 + $0x90] sm:$0xff] %v163
  %292 = vst [vmem:[%s2 + $0x98] sm:$0xff] %v164
  %293 = vst [vmem:[%s2 + $0xa0] sm:$0xff] %v165
  %294 = vst [vmem:[%s2 + $0xa8] sm:$0xff] %v166
  %295 = vst [vmem:[%s2 + $0xb0] sm:$0xff] %v167
  %296 = vst [vmem:[%s2 + $0xb8] sm:$0xff] %v168
  %297 = vst [vmem:[%s2 + $0xc0] sm:$0xff] %v169
  %298 = vst [vmem:[%s2 + $0xc8] sm:$0xff] %v170
  %299 = vst [vmem:[%s2 + $0xd0] sm:$0xff] %v171
  %300 = vst [vmem:[%s2 + $0xd8] sm:$0xff] %v172
  %301 = vst [vmem:[%s2 + $0xe0] sm:$0xff] %v173
  %302 = vst [vmem:[%s2 + $0xe8] sm:$0xff] %v174
  %303 = vst [vmem:[%s2 + $0xf0] sm:$0xff] %v175
  %304 = vst [vmem:[%s2 + $0xf8] sm:$0xff] %v176
  %305 = vst [vmem:[%s2 + $0x100] sm:$0xff] %v177
  %306 = vst [vmem:[%s2 + $0x108] sm:$0xff] %v178
  %307 = vst [vmem:[%s2 + $0x110] sm:$0xff] %v179
  %308 = vst [vmem:[%s2 + $0x118] sm:$0xff] %v180
  %309 = vst [vmem:[%s2 + $0x120] sm:$0xff] %v181
  %310 = vst [vmem:[%s2 + $0x128] sm:$0xff] %v182
  %311 = vst [vmem:[%s2 + $0x130] sm:$0xff] %v183
  %312 = vst [vmem:[%s2 + $0x138] sm:$0xff] %v184
  %313 = vst [vmem:[%s2 + $0x140] sm:$0xff] %v185
  %314 = vst [vmem:[%s2 + $0x148] sm:$0xff] %v186
  %315 = vst [vmem:[%s2 + $0x150] sm:$0xff] %v187
  %316 = vst [vmem:[%s2 + $0x158] sm:$0xff] %v188
  %317 = vst [vmem:[%s2 + $0x160] sm:$0xff] %v189
  %318 = vst [vmem:[%s2 + $0x168] sm:$0xff] %v190
  %319 = vst [vmem:[%s2 + $0x170] sm:$0xff] %v191
  %320 = vst [vmem:[%s2 + $0x178] sm:$0xff] %v192
  %321 = vst [vmem:[%s2 + $0x180] sm:$0xff] %v193
  %322 = vst [vmem:[%s2 + $0x188] sm:$0xff] %v194
  %323 = vst [vmem:[%s2 + $0x190] sm:$0xff] %v195
  %324 = vst [vmem:[%s2 + $0x198] sm:$0xff] %v196
  %325 = vst [vmem:[%s2 + $0x1a0] sm:$0xff] %v197
  %326 = vst [vmem:[%s2 + $0x1a8] sm:$0xff] %v198
  %327 = vst [vmem:[%s2 + $0x1b0] sm:$0xff] %v199
  %328 = vst [vmem:[%s2 + $0x1b8] sm:$0xff] %v200
  %329 = vst [vmem:[%s2 + $0x1c0] sm:$0xff] %v201
  %330 = vst [vmem:[%s2 + $0x1c8] sm:$0xff] %v202
  %331 = vst [vmem:[%s2 + $0x1d0] sm:$0xff] %v203
  %332 = vst [vmem:[%s2 + $0x1d8] sm:$0xff] %v204
  %333 = vst [vmem:[%s2 + $0x1e0] sm:$0xff] %v205
  %334 = vst [vmem:[%s2 + $0x1e8] sm:$0xff] %v206
  %335 = vst [vmem:[%s2 + $0x1f0] sm:$0xff] %v207
  %336 = vst [vmem:[%s2 + $0x1f8] sm:$0xff] %v208
  %337 = vst [vmem:[%s2 + $0x200] sm:$0xff] %v209
  %338 = vst [vmem:[%s2 + $0x208] sm:$0xff] %v210
  %339 = vst [vmem:[%s2 + $0x210] sm:$0xff] %v211
  %340 = vst [vmem:[%s2 + $0x218] sm:$0xff] %v212
  %341 = vst [vmem:[%s2 + $0x220] sm:$0xff] %v213
  %342 = vst [vmem:[%s2 + $0x228] sm:$0xff] %v214
  %343 = vst [vmem:[%s2 + $0x230] sm:$0xff] %v215
  %344 = vst [vmem:[%s2 + $0x238] sm:$0xff] %v216
  %345 = vst [vmem:[%s2 + $0x240] sm:$0xff] %v217
  %346 = vst [vmem:[%s2 + $0x248] sm:$0xff] %v218
  %347 = vst [vmem:[%s2 + $0x250] sm:$0xff] %v219
  %348 = vst [vmem:[%s2 + $0x258] sm:$0xff] %v220
  %349 = vst [vmem:[%s2 + $0x260] sm:$0xff] %v221
  %350 = vst [vmem:[%s2 + $0x268] sm:$0xff] %v222
  %351 = vst [vmem:[%s2 + $0x270] sm:$0xff] %v223
  %352 = vst [vmem:[%s2 + $0x278] sm:$0xff] %v224
  %353 = vst [vmem:[%s2 + $0x280] sm:$0xff] %v225
  %354 = vst [vmem:[%s2 + $0x288] sm:$0xff] %v226
  %355 = vst [vmem:[%s2 + $0x290] sm:$0xff] %v227
  %356 = vst [vmem:[%s2 + $0x298] sm:$0xff] %v228
  %357 = vst [vmem:[%s2 + $0x2a0] sm:$0xff] %v229
  %358 = vst [vmem:[%s2 + $0x2a8] sm:$0xff] %v230
  %359 = vst [vmem:[%s2 + $0x2b0] sm:$0xff] %v231
  %360 = vst [vmem:[%s2 + $0x2b8] sm:$0xff] %v232
  %361 = vst [vmem:[%s2 + $0x2c0] sm:$0xff] %v233
  %362 = vst [vmem:[%s2 + $0x2c8] sm:$0xff] %v234
  %363 = vst [vmem:[%s2 + $0x2d0] sm:$0xff] %v235
  %364 = vst [vmem:[%s2 + $0x2d8] sm:$0xff] %v236
  %365 = vst [vmem:[%s2 + $0x2e0] sm:$0xff] %v237
  %366 = vst [vmem:[%s2 + $0x2e8] sm:$0xff] %v238
  %367 = vst [vmem:[%s2 + $0x2f0] sm:$0xff] %v239
  %368 = vst [vmem:[%s2 + $0x2f8] sm:$0xff] %v240
  %369 = vst [vmem:[%s2 + $0x300] sm:$0xff] %v241
  %370 = vst [vmem:[%s2 + $0x308] sm:$0xff] %v242
  %371 = vst [vmem:[%s2 + $0x310] sm:$0xff] %v243
  %372 = vst [vmem:[%s2 + $0x318] sm:$0xff] %v244
  %373 = vst [vmem:[%s2 + $0x320] sm:$0xff] %v245
  %374 = vst [vmem:[%s2 + $0x328] sm:$0xff] %v246
  %375 = vst [vmem:[%s2 + $0x330] sm:$0xff] %v247
  %376 = vst [vmem:[%s2 + $0x338] sm:$0xff] %v248
  %377 = vst [vmem:[%s2 + $0x340] sm:$0xff] %v249
  %378 = vst [vmem:[%s2 + $0x348] sm:$0xff] %v250
  %379 = vst [vmem:[%s2 + $0x350] sm:$0xff] %v251
  %380 = vst [vmem:[%s2 + $0x358] sm:$0xff] %v252
  %381 = vst [vmem:[%s2 + $0x360] sm:$0xff] %v253
  %382 = vst [vmem:[%s2 + $0x368] sm:$0xff] %v254
  %383 = vst [vmem:[%s2 + $0x370] sm:$0xff] %v255
  %384 = vst [vmem:[%s2 + $0x378] sm:$0xff] %v256
  %385 = vst [vmem:[%s2 + $0x380] sm:$0xff] %v257
  %386 = vst [vmem:[%s2 + $0x388] sm:$0xff] %v258
  %387 = vst [vmem:[%s2 + $0x390] sm:$0xff] %v259
  %388 = vst [vmem:[%s2 + $0x398] sm:$0xff] %v260
  %389 = vst [vmem:[%s2 + $0x3a0] sm:$0xff] %v261
  %390 = vst [vmem:[%s2 + $0x3a8] sm:$0xff] %v262
  %391 = vst [vmem:[%s2 + $0x3b0] sm:$0xff] %v263
  %392 = vst [vmem:[%s2 + $0x3b8] sm:$0xff] %v264
  %393 = vst [vmem:[%s2 + $0x3c0] sm:$0xff] %v265
  %394 = vst [vmem:[%s2 + $0x3c8] sm:$0xff] %v266
  %395 = vst [vmem:[%s2 + $0x3d0] sm:$0xff] %v267
  %396 = vst [vmem:[%s2 + $0x3d8] sm:$0xff] %v268
  %397 = vst [vmem:[%s2 + $0x3e0] sm:$0xff] %v269
  %398 = vst [vmem:[%s2 + $0x3e8] sm:$0xff] %v270
  %399 = vst [vmem:[%s2 + $0x3f0] sm:$0xff] %v271
  %400 = vst [vmem:[%s2 + $0x3f8] sm:$0xff] %v272
  // Predicated region
  $region10: #{_encode_one.1} parent=0 // pred_check
    _
  $region11: #{_encode_one.1} parent=0 // pred_check_branch
    %402 = sbr.rel (0) target = $region13
  $region12: #{_encode_one.1} parent=0 // pred_region
    _
  $region13: #{_encode_one.1} parent=0 // pred_fallthru
    _
  // Predicated region
  $region14: #{_encode_one.1} parent=0 // pred_check
    _
  $region15: #{_encode_one.1} parent=0 // pred_check_branch
    %404 = sbr.rel (0) target = $region17
  $region16: #{_encode_one.1} parent=0 // pred_region
    _
  $region17: #{_encode_one.1} parent=0 // pred_fallthru
    _

</llo_original>
